<compile_context>
chip_gen: v5e
topology: v5e:2x2
jax: 0.10.0
libtpu: 0.0.40
codegen_flags: <defaults>
</compile_context>

<pallas_src>
import functools

import jax
import jax.numpy as jnp
from jax.experimental import pallas as pl
from jax.experimental.pallas import tpu as pltpu

NEG_INF = 1e9  # stands in for constants.INF (finite fill; fully-masked rows -> uniform weights, no NaN)


def _round_up(x, m):
    return ((x + m - 1) // m) * m


def _choose_tiles(nq, t):
    """Pick (TQ, TK) tile sizes: TQ multiple of 8 (<=256), TK multiple of 128 (<=1024)."""
    nq8 = _round_up(max(nq, 1), 8)
    tq = nq8 if nq8 <= 256 else 256
    t128 = _round_up(max(t, 1), 128)
    tk = t128 if t128 <= 1024 else 512
    return tq, tk


def _flash_attention_kernel(*refs, has_mask, t_valid, tk):
    """One (batch, q-tile) output block; loops over KV tiles along grid axis 2.

    refs (has_mask=True):  q (TQ,D), k (TK,D), v (TK,H), m (1,TK)|(TQ,TK) i32,
                           o (TQ,H), m_sc (TQ,1), l_sc (TQ,1), acc_sc (TQ,H)
    refs (has_mask=False): same without the mask ref.
    t_valid: true (unpadded) T when key padding must be masked via iota, else None.
    """
    if has_mask:
        q_ref, k_ref, v_ref, m_ref, o_ref, m_sc, l_sc, acc_sc = refs
    else:
        q_ref, k_ref, v_ref, o_ref, m_sc, l_sc, acc_sc = refs
        m_ref = None

    kv = pl.program_id(2)

    @pl.when(kv == 0)
    def _():
        m_sc[...] = jnp.full_like(m_sc, -jnp.inf)
        l_sc[...] = jnp.zeros_like(l_sc)
        acc_sc[...] = jnp.zeros_like(acc_sc)

    q = q_ref[...]
    k = k_ref[...]
    v = v_ref[...]

    # score = Q @ K^T  -> (TQ, TK) on the MXU, f32 accumulate.
    s = jax.lax.dot_general(
        q, k,
        dimension_numbers=(((1,), (1,)), ((), ())),
        preferred_element_type=jnp.float32,
    )

    # masked_fill(mask == 0, -INF).  Static dispatch: only one branch is compiled.
    if has_mask:
        # (1, TK) key mask broadcasts across query rows; (TQ, TK) applies per query.
        s = jnp.where(m_ref[...] == 0, -NEG_INF, s)
    elif t_valid is not None:
        # mask is None but T was padded: mask padded key columns via iota (no mask DMA).
        col = kv * tk + jax.lax.broadcasted_iota(jnp.int32, (1, tk), 1)
        s = jnp.where(col < t_valid, s, -NEG_INF)

    # Online (flash) softmax update.
    m_prev = m_sc[...]
    m_new = jnp.maximum(m_prev, jnp.max(s, axis=-1, keepdims=True))
    alpha = jnp.exp(m_prev - m_new)
    p = jnp.exp(s - m_new)
    l_sc[...] = alpha * l_sc[...] + jnp.sum(p, axis=-1, keepdims=True)
    # Cast probabilities to the value dtype -> native MXU path for bf16 values.
    acc_sc[...] = alpha * acc_sc[...] + jnp.dot(
        p.astype(v.dtype), v, preferred_element_type=jnp.float32)
    m_sc[...] = m_new

    # F.dropout(weights, training=False) is the identity -> no-op here.

    @pl.when(kv == pl.num_programs(2) - 1)
    def _():
        inv_l = pl.reciprocal(l_sc[...], approx=True)
        o_ref[...] = (acc_sc[...] * inv_l).astype(o_ref.dtype)


def _attention_pallas(q, k, v, mask, mask_per_query, t_valid, tq, tk):
    """q: (B, NqP, DP), k: (B, TP, DP), v: (B, TP, HP),
    mask: (B, 1|NqP, TP) int32 or None (then t_valid drives padding masking)."""
    B, nq_pad, d_pad = q.shape
    _, t_pad, h_pad = v.shape
    grid = (B, nq_pad // tq, t_pad // tk)
    has_mask = mask is not None

    in_specs = [
        pl.BlockSpec((None, tq, d_pad), lambda b, qi, ki: (b, qi, 0)),
        pl.BlockSpec((None, tk, d_pad), lambda b, qi, ki: (b, ki, 0)),
        pl.BlockSpec((None, tk, h_pad), lambda b, qi, ki: (b, ki, 0)),
    ]
    inputs = [q, k, v]
    if has_mask:
        if mask_per_query:
            in_specs.append(pl.BlockSpec((None, tq, tk), lambda b, qi, ki: (b, qi, ki)))
        else:
            in_specs.append(pl.BlockSpec((None, 1, tk), lambda b, qi, ki: (b, 0, ki)))
        inputs.append(mask)

    grid_spec = pltpu.PrefetchScalarGridSpec(
        num_scalar_prefetch=0,
        grid=grid,
        in_specs=in_specs,
        out_specs=pl.BlockSpec((None, tq, h_pad), lambda b, qi, ki: (b, qi, 0)),
        scratch_shapes=[
            pltpu.VMEM((tq, 1), jnp.float32),      # running max
            pltpu.VMEM((tq, 1), jnp.float32),      # running denom
            pltpu.VMEM((tq, h_pad), jnp.float32),  # output accumulator
        ],
    )

    kernel = functools.partial(
        _flash_attention_kernel, has_mask=has_mask, t_valid=t_valid, tk=tk)

    return pl.pallas_call(
        kernel,
        out_shape=jax.ShapeDtypeStruct((B, nq_pad, h_pad), q.dtype),
        grid_spec=grid_spec,
        compiler_params=pltpu.CompilerParams(
            dimension_semantics=("parallel", "parallel", "arbitrary")),
    )(*inputs)


def attention_forward(query, key, value, mask=None, dropout=0.0, training=False,
                      tq=None, tk=None):
    """Mirrors Attention.forward (dot-product _score, eval-mode dropout).

    query: (B, Dq) or (B, Nq, Dq); key: (B, T, Dk); value: (B, T, H);
    mask: (B, T) or (B, Nq, T) or None.  Returns (B, H) or (B, Nq, H).
    """
    single_query = query.ndim == 2
    if single_query:
        query = query[:, None, :]

    B, nq, d = query.shape
    _, t, dk = key.shape
    _, _, h = value.shape
    assert d == dk, "dot-product attention requires query_size == key_size"

    auto_tq, auto_tk = _choose_tiles(nq, t)
    tq = auto_tq if tq is None else tq
    tk = auto_tk if tk is None else tk
    assert tq % 8 == 0 and tk % 128 == 0

    nq_pad = _round_up(nq, tq)
    t_pad = _round_up(t, tk)
    d_pad = _round_up(d, 128)
    h_pad = _round_up(h, 128)

    qp = jnp.pad(query, ((0, 0), (0, nq_pad - nq), (0, d_pad - d)))
    kp = jnp.pad(key, ((0, 0), (0, t_pad - t), (0, d_pad - d)))
    vp = jnp.pad(value, ((0, 0), (0, t_pad - t), (0, h_pad - h)))

    # Mask: padded key positions must always be masked out.
    if mask is None:
        mask_per_query = False
        m_pad = None
        t_valid = t if t_pad > t else None  # iota-based padding mask only when needed
    elif mask.ndim == 2:
        mask_per_query = False
        m_pad = jnp.pad(mask.astype(jnp.int32), ((0, 0), (0, t_pad - t)))
        m_pad = m_pad[:, None, :]                                    # (B, 1, TP)
        t_valid = None
    else:
        assert mask.shape[1] == nq
        mask_per_query = True
        m_pad = jnp.pad(mask.astype(jnp.int32),
                        ((0, 0), (0, nq_pad - nq), (0, t_pad - t)))  # (B, NqP, TP)
        t_valid = None

    # TODO(synk): dropout with training=True (random weight masking) is not implemented;
    # this forward corresponds to eval mode where F.dropout is the identity.
    del dropout, training

    out = _attention_pallas(qp, kp, vp, m_pad, mask_per_query, t_valid, tq, tk)
    out = out[:, :nq, :h]
    if single_query:
        out = out[:, 0, :]
    return out


def _reference(query, key, value, mask=None):
    """Pure-JAX reference matching the PyTorch forward (eval mode)."""
    single_query = query.ndim == 2
    if single_query:
        query = query[:, None, :]
    score = jnp.einsum("bqd,btd->bqt", query, key)
    if mask is not None:
        if mask.ndim == 2:
            mask = mask[:, None, :]
        score = jnp.where(mask == 0, -NEG_INF, score)
    weights = jax.nn.softmax(score, axis=-1)
    out = jnp.einsum("bqt,bth->bqh", weights, value)
    if single_query:
        out = out[:, 0, :]
    return out


if __name__ == "__main__":
    rng = jax.random.PRNGKey(0)
    k1, k2, k3, k4, k5 = jax.random.split(rng, 5)

    # --- Case 1: small 3-D query, 2-D key mask ----------------------------------------
    B, Nq, T, D, H = 2, 8, 8, 32, 32
    query = jax.random.normal(k1, (B, Nq, D), dtype=jnp.float32)
    key_t = jax.random.normal(k2, (B, T, D), dtype=jnp.float32)
    value = jax.random.normal(k3, (B, T, H), dtype=jnp.float32)
    mask2 = (jax.random.uniform(k4, (B, T)) > 0.3).astype(jnp.int32)
    mask2 = mask2.at[:, 0].set(1)  # no fully-masked rows

    out = jax.block_until_ready(attention_forward(query, key_t, value, mask=mask2,
                                                  dropout=0.1, training=False))
    ref = _reference(query, key_t, value, mask2)
    assert out.shape == (B, Nq, H)
    assert jnp.allclose(out, ref, atol=1e-2, rtol=1e-2), "mismatch vs reference (case 1)"

    # --- Case 2: single-query (2-D query) path ---------------------------------------
    out1 = jax.block_until_ready(attention_forward(query[:, 0, :], key_t, value, mask=mask2))
    assert out1.shape == (B, H)
    assert jnp.allclose(out1, ref[:, 0, :], atol=1e-2, rtol=1e-2), "mismatch (case 2)"

    # --- Case 3: per-query 3-D mask ---------------------------------------------------
    mask3 = (jax.random.uniform(k5, (B, Nq, T)) > 0.3).astype(jnp.int32)
    mask3 = mask3.at[:, :, 0].set(1)
    out3 = jax.block_until_ready(attention_forward(query, key_t, value, mask=mask3))
    ref3 = _reference(query, key_t, value, mask3)
    assert jnp.allclose(out3, ref3, atol=1e-2, rtol=1e-2), "mismatch (case 3)"

    # --- Case 4: multiple Q and KV tiles (exercise the online-softmax accumulation) ---
    B4, Nq4, T4 = 2, 16, 256
    q4 = jax.random.normal(k1, (B4, Nq4, D), dtype=jnp.float32)
    kk4 = jax.random.normal(k2, (B4, T4, D), dtype=jnp.float32)
    v4 = jax.random.normal(k3, (B4, T4, H), dtype=jnp.float32)
    m4 = (jax.random.uniform(k4, (B4, T4)) > 0.3).astype(jnp.int32)
    m4 = m4.at[:, 0].set(1)
    out4 = jax.block_until_ready(
        attention_forward(q4, kk4, v4, mask=m4, tq=8, tk=128))  # 2 q-tiles x 2 kv-tiles
    ref4 = _reference(q4, kk4, v4, m4)
    assert jnp.allclose(out4, ref4, atol=1e-2, rtol=1e-2), "mismatch (case 4)"

    # --- Case 5: mask=None with ragged shapes (iota padding-mask fast path) -----------
    B5, Nq5, T5, D5, H5 = 2, 5, 200, 20, 40
    q5 = jax.random.normal(k1, (B5, Nq5, D5), dtype=jnp.float32)
    kk5 = jax.random.normal(k2, (B5, T5, D5), dtype=jnp.float32)
    v5 = jax.random.normal(k3, (B5, T5, H5), dtype=jnp.float32)
    out5 = jax.block_until_ready(attention_forward(q5, kk5, v5, mask=None, tk=128))
    ref5 = _reference(q5, kk5, v5, None)
    assert out5.shape == (B5, Nq5, H5)
    assert jnp.allclose(out5, ref5, atol=1e-2, rtol=1e-2), "mismatch (case 5)"

    # --- Case 6: mask=None, aligned shapes (no-mask fast path, no masking op at all) --
    out6 = jax.block_until_ready(attention_forward(query, key_t, value, mask=None))
    ref6 = _reference(query, key_t, value, None)
    assert jnp.allclose(out6, ref6, atol=1e-2, rtol=1e-2), "mismatch (case 6)"

    print("KERNEL_OK")
</pallas_src>

<mosaic_0001>
module attributes {stable_mosaic.version = 11 : i64} {
  func.func @_flash_attention_kernel(%arg0: i32, %arg1: i32, %arg2: i32, %arg3: memref<1x8x128xf32, #tpu.memory_space<vmem>>, %arg4: memref<1x128x128xf32, #tpu.memory_space<vmem>>, %arg5: memref<1x128x128xf32, #tpu.memory_space<vmem>>, %arg6: memref<1x1x128xi32, #tpu.memory_space<vmem>>, %arg7: memref<1x8x128xf32, #tpu.memory_space<vmem>>, %arg8: memref<8x1xf32, #tpu.memory_space<vmem>>, %arg9: memref<8x1xf32, #tpu.memory_space<vmem>>, %arg10: memref<8x128xf32, #tpu.memory_space<vmem>>) attributes {dimension_semantics = [#tpu.dimension_semantics<parallel>, #tpu.dimension_semantics<parallel>, #tpu.dimension_semantics<arbitrary>], iteration_bounds = array<i64: 2, 1, 1>, scalar_prefetch = 0 : i64, scratch_operands = 3 : i64, tpu.core_type = #tpu.core_type<tc>, window_params = [{transform_indices = @transform_0, window_bounds = array<i64: 1, 8, 128>}, {transform_indices = @transform_1, window_bounds = array<i64: 1, 128, 128>}, {transform_indices = @transform_2, window_bounds = array<i64: 1, 128, 128>}, {transform_indices = @transform_3, window_bounds = array<i64: 1, 1, 128>}, {transform_indices = @transform_4, window_bounds = array<i64: 1, 8, 128>}]} {
    %c0_i32 = arith.constant 0 : i32
    %0 = arith.cmpi eq, %arg2, %c0_i32 : i32
    %1 = arith.extui %0 : i1 to i32
    %c0_i32_0 = arith.constant 0 : i32
    %2 = arith.cmpi ne, %1, %c0_i32_0 : i32
    scf.if %2 {
      %cst_31 = arith.constant 0xFF800000 : f32
      %43 = vector.broadcast %cst_31 : f32 to vector<8x1xf32>
      %c0_32 = arith.constant 0 : index
      %c0_33 = arith.constant 0 : index
      %44 = vector.load %arg8[%c0_32, %c0_33] : memref<8x1xf32, #tpu.memory_space<vmem>>, vector<8x1xf32>
      tpu.vector_store %arg8[%c0_32, %c0_33], %43 {strides = array<i32>} : memref<8x1xf32, #tpu.memory_space<vmem>>, vector<8x1xf32>,
      %cst_34 = arith.constant 0.000000e+00 : f32
      %45 = vector.broadcast %cst_34 : f32 to vector<8x1xf32>
      %c0_35 = arith.constant 0 : index
      %c0_36 = arith.constant 0 : index
      %46 = vector.load %arg9[%c0_35, %c0_36] : memref<8x1xf32, #tpu.memory_space<vmem>>, vector<8x1xf32>
      tpu.vector_store %arg9[%c0_35, %c0_36], %45 {strides = array<i32>} : memref<8x1xf32, #tpu.memory_space<vmem>>, vector<8x1xf32>,
      %cst_37 = arith.constant 0.000000e+00 : f32
      %47 = vector.broadcast %cst_37 : f32 to vector<8x128xf32>
      %c0_38 = arith.constant 0 : index
      %c0_39 = arith.constant 0 : index
      %48 = vector.load %arg10[%c0_38, %c0_39] : memref<8x128xf32, #tpu.memory_space<vmem>>, vector<8x128xf32>
      tpu.vector_store %arg10[%c0_38, %c0_39], %47 {strides = array<i32>} : memref<8x128xf32, #tpu.memory_space<vmem>>, vector<8x128xf32>,
    } else {
    }
    %c0 = arith.constant 0 : index
    %c0_1 = arith.constant 0 : index
    %c0_2 = arith.constant 0 : index
    %3 = vector.load %arg3[%c0, %c0_1, %c0_2] : memref<1x8x128xf32, #tpu.memory_space<vmem>>, vector<1x8x128xf32>
    %4 = vector.shape_cast %3 : vector<1x8x128xf32> to vector<8x128xf32>
    %c0_3 = arith.constant 0 : index
    %c0_4 = arith.constant 0 : index
    %c0_5 = arith.constant 0 : index
    %5 = vector.load %arg4[%c0_3, %c0_4, %c0_5] : memref<1x128x128xf32, #tpu.memory_space<vmem>>, vector<1x128x128xf32>
    %6 = vector.shape_cast %5 : vector<1x128x128xf32> to vector<128x128xf32>
    %c0_6 = arith.constant 0 : index
    %c0_7 = arith.constant 0 : index
    %c0_8 = arith.constant 0 : index
    %7 = vector.load %arg5[%c0_6, %c0_7, %c0_8] : memref<1x128x128xf32, #tpu.memory_space<vmem>>, vector<1x128x128xf32>
    %8 = vector.shape_cast %7 : vector<1x128x128xf32> to vector<128x128xf32>
    %cst = arith.constant dense<0.000000e+00> : vector<8x128xf32>
    %9 = tpu.matmul %4, %6, %cst {dimension_numbers = #tpu.dot_dimension_numbers<[1], [1], [0], [0], [0, 0, 1, 0], [], []>} : vector<8x128xf32>, vector<128x128xf32>, vector<8x128xf32> -> vector<8x128xf32>
    %c0_9 = arith.constant 0 : index
    %c0_10 = arith.constant 0 : index
    %c0_11 = arith.constant 0 : index
    %10 = vector.load %arg6[%c0_9, %c0_10, %c0_11] : memref<1x1x128xi32, #tpu.memory_space<vmem>>, vector<1x1x128xi32>
    %11 = vector.shape_cast %10 : vector<1x1x128xi32> to vector<1x128xi32>
    %c0_i32_12 = arith.constant 0 : i32
    %12 = vector.broadcast %c0_i32_12 : i32 to vector<1x128xi32>
    %13 = arith.cmpi eq, %11, %12 : vector<1x128xi32>
    %cst_13 = arith.constant -1.000000e+09 : f32
    %14 = vector.shape_cast %13 : vector<1x128xi1> to vector<1x128xi1>
    %15 = vector.broadcast %14 : vector<1x128xi1> to vector<8x128xi1>
    %16 = vector.broadcast %cst_13 : f32 to vector<8x128xf32>
    %17 = arith.select %15, %16, %9 : vector<8x128xi1>, vector<8x128xf32>
    %c0_14 = arith.constant 0 : index
    %c0_15 = arith.constant 0 : index
    %18 = vector.load %arg8[%c0_14, %c0_15] : memref<8x1xf32, #tpu.memory_space<vmem>>, vector<8x1xf32>
    %cst_16 = arith.constant dense<0xFF800000> : vector<8xf32>
    %19 = vector.multi_reduction <maximumf>, %17, %cst_16 [1] : vector<8x128xf32> to vector<8xf32>
    %20 = vector.shape_cast %19 : vector<8xf32> to vector<8x1xf32>
    %21 = arith.maximumf %18, %20 : vector<8x1xf32>
    %22 = arith.subf %18, %21 : vector<8x1xf32>
    %23 = math.exp %22 : vector<8x1xf32>
    %24 = vector.broadcast %21 : vector<8x1xf32> to vector<8x128xf32>
    %25 = arith.subf %17, %24 : vector<8x128xf32>
    %26 = math.exp %25 : vector<8x128xf32>
    %c0_17 = arith.constant 0 : index
    %c0_18 = arith.constant 0 : index
    %27 = vector.load %arg9[%c0_17, %c0_18] : memref<8x1xf32, #tpu.memory_space<vmem>>, vector<8x1xf32>
    %28 = arith.mulf %23, %27 : vector<8x1xf32>
    %cst_19 = arith.constant dense<0.000000e+00> : vector<8xf32>
    %29 = vector.multi_reduction <add>, %26, %cst_19 [1] : vector<8x128xf32> to vector<8xf32>
    %30 = vector.shape_cast %29 : vector<8xf32> to vector<8x1xf32>
    %31 = arith.addf %28, %30 : vector<8x1xf32>
    %c0_20 = arith.constant 0 : index
    %c0_21 = arith.constant 0 : index
    %32 = vector.load %arg9[%c0_20, %c0_21] : memref<8x1xf32, #tpu.memory_space<vmem>>, vector<8x1xf32>
    tpu.vector_store %arg9[%c0_20, %c0_21], %31 {strides = array<i32>} : memref<8x1xf32, #tpu.memory_space<vmem>>, vector<8x1xf32>,
    %c0_22 = arith.constant 0 : index
    %c0_23 = arith.constant 0 : index
    %33 = vector.load %arg10[%c0_22, %c0_23] : memref<8x128xf32, #tpu.memory_space<vmem>>, vector<8x128xf32>
    %34 = vector.broadcast %23 : vector<8x1xf32> to vector<8x128xf32>
    %35 = arith.mulf %34, %33 : vector<8x128xf32>
    %cst_24 = arith.constant dense<0.000000e+00> : vector<8x128xf32>
    %36 = tpu.matmul %26, %8, %cst_24 {dimension_numbers = #tpu.dot_dimension_numbers<[1], [0], [0], [1], [0, 0, 1, 1], [], []>} : vector<8x128xf32>, vector<128x128xf32>, vector<8x128xf32> -> vector<8x128xf32>
    %37 = arith.addf %35, %36 : vector<8x128xf32>
    %c0_25 = arith.constant 0 : index
    %c0_26 = arith.constant 0 : index
    %38 = vector.load %arg10[%c0_25, %c0_26] : memref<8x128xf32, #tpu.memory_space<vmem>>, vector<8x128xf32>
    tpu.vector_store %arg10[%c0_25, %c0_26], %37 {strides = array<i32>} : memref<8x128xf32, #tpu.memory_space<vmem>>, vector<8x128xf32>,
    %c0_27 = arith.constant 0 : index
    %c0_28 = arith.constant 0 : index
    %39 = vector.load %arg8[%c0_27, %c0_28] : memref<8x1xf32, #tpu.memory_space<vmem>>, vector<8x1xf32>
    tpu.vector_store %arg8[%c0_27, %c0_28], %21 {strides = array<i32>} : memref<8x1xf32, #tpu.memory_space<vmem>>, vector<8x1xf32>,
    %c0_i32_29 = arith.constant 0 : i32
    %40 = arith.cmpi eq, %arg2, %c0_i32_29 : i32
    %41 = arith.extui %40 : i1 to i32
    %c0_i32_30 = arith.constant 0 : i32
    %42 = arith.cmpi ne, %41, %c0_i32_30 : i32
    scf.if %42 {
      %c0_31 = arith.constant 0 : index
      %c0_32 = arith.constant 0 : index
      %43 = vector.load %arg9[%c0_31, %c0_32] : memref<8x1xf32, #tpu.memory_space<vmem>>, vector<8x1xf32>
      %44 = tpu.reciprocal %43 {approx = true} : vector<8x1xf32> -> vector<8x1xf32>
      %c0_33 = arith.constant 0 : index
      %c0_34 = arith.constant 0 : index
      %45 = vector.load %arg10[%c0_33, %c0_34] : memref<8x128xf32, #tpu.memory_space<vmem>>, vector<8x128xf32>
      %46 = vector.broadcast %44 : vector<8x1xf32> to vector<8x128xf32>
      %47 = arith.mulf %45, %46 : vector<8x128xf32>
      %c0_35 = arith.constant 0 : index
      %c0_36 = arith.constant 0 : index
      %c0_37 = arith.constant 0 : index
      %48 = vector.load %arg7[%c0_35, %c0_36, %c0_37] : memref<1x8x128xf32, #tpu.memory_space<vmem>>, vector<1x8x128xf32>
      %49 = vector.shape_cast %48 : vector<1x8x128xf32> to vector<8x128xf32>
      %50 = vector.shape_cast %47 : vector<8x128xf32> to vector<1x8x128xf32>
      tpu.vector_store %arg7[%c0_35, %c0_36, %c0_37], %50 {strides = array<i32>} : memref<1x8x128xf32, #tpu.memory_space<vmem>>, vector<1x8x128xf32>,
    } else {
    }
    return
  }
  func.func @transform_0(%arg0: i32, %arg1: i32, %arg2: i32) -> (i32, i32, i32) {
    %c0_i32 = arith.constant 0 : i32
    %c0_i32_0 = arith.constant 0 : i32
    return %arg0, %arg1, %c0_i32 : i32, i32, i32
  }
  func.func @transform_1(%arg0: i32, %arg1: i32, %arg2: i32) -> (i32, i32, i32) {
    %c0_i32 = arith.constant 0 : i32
    %c0_i32_0 = arith.constant 0 : i32
    return %arg0, %arg2, %c0_i32 : i32, i32, i32
  }
  func.func @transform_2(%arg0: i32, %arg1: i32, %arg2: i32) -> (i32, i32, i32) {
    %c0_i32 = arith.constant 0 : i32
    %c0_i32_0 = arith.constant 0 : i32
    return %arg0, %arg2, %c0_i32 : i32, i32, i32
  }
  func.func @transform_3(%arg0: i32, %arg1: i32, %arg2: i32) -> (i32, i32, i32) {
    %c0_i32 = arith.constant 0 : i32
    %c0_i32_0 = arith.constant 0 : i32
    return %arg0, %c0_i32, %arg2 : i32, i32, i32
  }
  func.func @transform_4(%arg0: i32, %arg1: i32, %arg2: i32) -> (i32, i32, i32) {
    %c0_i32 = arith.constant 0 : i32
    %c0_i32_0 = arith.constant 0 : i32
    return %arg0, %arg1, %c0_i32 : i32, i32, i32
  }
}

</mosaic_0001>

<llo_original>
// kernel: tpu_custom_call.1
$region0: #{tpu_custom_call.1}
  #allocation0 [shape = 'u32[]', space=smem, size = 0x4, offset = 0x4, fixed_abs, tag = 'smem constant byte address 0x4 - core index']
  #allocation1 [shape = 'u32[72,128]{1,0:T(1,128)}', space=vmem, size = 0x9000, scoped, tag = 'internal scratch']
  #allocation2 [shape = 'f32[8,1]{1,0:T(8,128)}', space=vmem, size = 0x1000, scoped, tag = 'scratch operand']
  #allocation3 [shape = 'f32[8,1]{1,0:T(8,128)}', space=vmem, size = 0x1000, scoped, tag = 'scratch operand']
  #allocation4 [shape = 'f32[8,128]{1,0:T(8,128)}', space=vmem, size = 0x1000, scoped, tag = 'scratch operand']
  %s0 = inlined_call_operand.hbm [shape: f32[2,8,128], index: 0, kind: input, shape index: {}]
  %s1 = inlined_call_operand.hbm [shape: f32[2,128,128], index: 1, kind: input, shape index: {}]
  %s2 = inlined_call_operand.hbm [shape: f32[2,128,128], index: 2, kind: input, shape index: {}]
  %s3 = inlined_call_operand.vmem [shape: s32[2,1,128], index: 3, kind: input, shape index: {}]
  %s4 = inlined_call_operand.hbm [shape: f32[2,8,128], index: 4, kind: output, shape index: {}]
  %s5 = sld [smem:[#allocation0]]
  $region69: #{tpu_custom_call.1} parent=0
    _
  %s7 = ssub.s32 1, %s5
  %s8 = scalar_select 0, %s7, %s5
  $region1: #{tpu_custom_call.1} parent=0
    #allocation5 [shape = 'u8[8192]{0}', space=vmem, size = 0x2000, scoped, tag = 'input window, operand 0']
    #allocation6 [shape = 's32[2]{0}', space=sflag, size = 0x8, scoped, tag = 'scoped memory for tpu_custom_call.1']
    #allocation7 [shape = 's32[2]{0}', space=sflag, size = 0x8, scoped, tag = 'scoped memory for tpu_custom_call.1']
    #allocation8 [shape = 'u8[131072]{0}', space=vmem, size = 0x20000, scoped, tag = 'input window, operand 1']
    #allocation9 [shape = 's32[2]{0}', space=sflag, size = 0x8, scoped, tag = 'scoped memory for tpu_custom_call.1']
    #allocation10 [shape = 'u8[131072]{0}', space=vmem, size = 0x20000, scoped, tag = 'input window, operand 2']
    #allocation11 [shape = 'u8[8192]{0}', space=vmem, size = 0x2000, scoped, tag = 'output window, operand 0']
    %9 = vsyncpa [#allocation6], 0
    %s10 = scalar_lea.sflag [#allocation6], 1
    %11 = vsyncpa %s10, 0
    %12 = vsyncpa [#allocation9], 0
    %s13 = scalar_lea.sflag [#allocation9], 1
    %14 = vsyncpa %s13, 0
    %15 = vsyncpa [#allocation7], 0
    %s16 = scalar_lea.sflag [#allocation7], 1
    %17 = vsyncpa %s16, 0
    loop: start=0, step=1, limit=4
    $region2: #{tpu_custom_call.1} parent=1 // loop_pre_header
      _
    $region3: #{tpu_custom_call.1} parent=1 // loop_header
      %s19 = sphi 0, %s23
      %p20 = scmp.ge.s32.totalorder %s19, 4
      %s26 = sphi 0, %s45
      %s27 = sphi 0, %s41
      %s28 = sphi 0, %s37
      %s29 = sphi 0, %s26
      %s30 = sphi 0, %s27
      %s31 = sphi 0, %s28
      %s32 = sphi 0, %s29
      %s33 = sphi 0, %s30
      %s34 = sphi 0, %s31
      %s50 = sphi 0, %s52
      %s53 = sphi 0, %s50
      %s54 = sphi 0, %s53
      %s70 = sphi 0, %s54
      %s78 = sphi 0, %s80
      %s81 = sphi 0, %s78
      %s82 = sphi 0, %s81
      %s98 = sphi 0, %s82
      %s106 = sphi 0, %s108
      %s109 = sphi 0, %s106
      %s110 = sphi 0, %s109
      %s126 = sphi 0, %s110
      %s134 = sphi 0, %s136
      %s137 = sphi 0, %s134
      %s138 = sphi 0, %s137
      %s154 = sphi 0, %s138
      %s162 = sphi 0, %s164
      %s165 = sphi 0, %s162
      %s166 = sphi 0, %s165
      %s182 = sphi 0, %s166
    $region4: #{tpu_custom_call.1} parent=1 // loop_header_branch
      %22 = sbr.rel (%p20) target = $region8
    $region5: #{tpu_custom_call.1} parent=1 // loop_body
      %s24 = ssub.s32 %s19, 1
      %s25 = ssub.s32 %s19, 2
      %s35 = sadd.s32 1, %s28
      %p36 = scmp.ge.s32.totalorder %s35, 1
      %s37 = scalar_select %p36, 0, %s35
      %s38 = sadd.s32 1, %s27
      %s39 = scalar_select %p36, %s38, %s27
      %p40 = scmp.ge.s32.totalorder %s39, 1
      %s41 = scalar_select %p40, 0, %s39
      %s42 = sadd.s32 1, %s26
      %s43 = scalar_select %p40, %s42, %s26
      %p44 = scmp.ge.s32.totalorder %s43, 2
      %s45 = scalar_select %p44, 0, %s43
      %s46 = ssub.s32 %s26, %s45
      %s47 = ssub.s32 %s27, %s41
      %s48 = sor.u32 %s46, %s47
      %p49 = scmp.eq.s32.totalorder %s48, 0
      %s51 = sadd.s32 %s50, 1
      %s52 = scalar_select %p49, %s50, %s51
      %p55 = pneg %p49
      %p56 = scmp.eq.s32.totalorder %s19, 1
      %p57 = por %p55, %p56
      %p58 = scmp.ne.s32.totalorder %s50, %s53
      %p59 = scmp.eq.s32.totalorder %s19, 0
      %p60 = por %p58, %p59
      %p61 = scmp.ne.s32.totalorder %s50, %s53
      %p62 = scmp.eq.s32.totalorder %s24, 1
      %p63 = por %p61, %p62
      %p64 = scmp.ne.s32.totalorder %s53, %s54
      %p65 = scmp.eq.s32.totalorder %s24, 0
      %p66 = por %p64, %p65
      %p67 = scmp.ne.s32.totalorder %s53, %s54
      %p68 = scmp.eq.s32.totalorder %s25, 1
      %p69 = por %p67, %p68
      %p71 = scmp.ne.s32.totalorder %s54, %s70
      %p72 = scmp.eq.s32.totalorder %s25, 0
      %p73 = por %p71, %p72
      %s74 = ssub.s32 %s26, %s45
      %s75 = ssub.s32 %s28, %s37
      %s76 = sor.u32 %s74, %s75
      %p77 = scmp.eq.s32.totalorder %s76, 0
      %s79 = sadd.s32 %s78, 1
      %s80 = scalar_select %p77, %s78, %s79
      %p83 = pneg %p77
      %p84 = scmp.eq.s32.totalorder %s19, 1
      %p85 = por %p83, %p84
      %p86 = scmp.ne.s32.totalorder %s78, %s81
      %p87 = scmp.eq.s32.totalorder %s19, 0
      %p88 = por %p86, %p87
      %p89 = scmp.ne.s32.totalorder %s78, %s81
      %p90 = scmp.eq.s32.totalorder %s24, 1
      %p91 = por %p89, %p90
      %p92 = scmp.ne.s32.totalorder %s81, %s82
      %p93 = scmp.eq.s32.totalorder %s24, 0
      %p94 = por %p92, %p93
      %p95 = scmp.ne.s32.totalorder %s81, %s82
      %p96 = scmp.eq.s32.totalorder %s25, 1
      %p97 = por %p95, %p96
      %p99 = scmp.ne.s32.totalorder %s82, %s98
      %p100 = scmp.eq.s32.totalorder %s25, 0
      %p101 = por %p99, %p100
      %s102 = ssub.s32 %s26, %s45
      %s103 = ssub.s32 %s28, %s37
      %s104 = sor.u32 %s102, %s103
      %p105 = scmp.eq.s32.totalorder %s104, 0
      %s107 = sadd.s32 %s106, 1
      %s108 = scalar_select %p105, %s106, %s107
      %p111 = pneg %p105
      %p112 = scmp.eq.s32.totalorder %s19, 1
      %p113 = por %p111, %p112
      %p114 = scmp.ne.s32.totalorder %s106, %s109
      %p115 = scmp.eq.s32.totalorder %s19, 0
      %p116 = por %p114, %p115
      %p117 = scmp.ne.s32.totalorder %s106, %s109
      %p118 = scmp.eq.s32.totalorder %s24, 1
      %p119 = por %p117, %p118
      %p120 = scmp.ne.s32.totalorder %s109, %s110
      %p121 = scmp.eq.s32.totalorder %s24, 0
      %p122 = por %p120, %p121
      %p123 = scmp.ne.s32.totalorder %s109, %s110
      %p124 = scmp.eq.s32.totalorder %s25, 1
      %p125 = por %p123, %p124
      %p127 = scmp.ne.s32.totalorder %s110, %s126
      %p128 = scmp.eq.s32.totalorder %s25, 0
      %p129 = por %p127, %p128
      %s130 = ssub.s32 %s26, %s45
      %s131 = ssub.s32 %s28, %s37
      %s132 = sor.u32 %s130, %s131
      %p133 = scmp.eq.s32.totalorder %s132, 0
      %s135 = sadd.s32 %s134, 1
      %s136 = scalar_select %p133, %s134, %s135
      %p139 = pneg %p133
      %p140 = scmp.eq.s32.totalorder %s19, 1
      %p141 = por %p139, %p140
      %p142 = scmp.ne.s32.totalorder %s134, %s137
      %p143 = scmp.eq.s32.totalorder %s19, 0
      %p144 = por %p142, %p143
      %p145 = scmp.ne.s32.totalorder %s134, %s137
      %p146 = scmp.eq.s32.totalorder %s24, 1
      %p147 = por %p145, %p146
      %p148 = scmp.ne.s32.totalorder %s137, %s138
      %p149 = scmp.eq.s32.totalorder %s24, 0
      %p150 = por %p148, %p149
      %p151 = scmp.ne.s32.totalorder %s137, %s138
      %p152 = scmp.eq.s32.totalorder %s25, 1
      %p153 = por %p151, %p152
      %p155 = scmp.ne.s32.totalorder %s138, %s154
      %p156 = scmp.eq.s32.totalorder %s25, 0
      %p157 = por %p155, %p156
      %s158 = ssub.s32 %s26, %s45
      %s159 = ssub.s32 %s27, %s41
      %s160 = sor.u32 %s158, %s159
      %p161 = scmp.eq.s32.totalorder %s160, 0
      %s163 = sadd.s32 %s162, 1
      %s164 = scalar_select %p161, %s162, %s163
      %p167 = pneg %p161
      %p168 = scmp.eq.s32.totalorder %s19, 1
      %p169 = por %p167, %p168
      %p170 = scmp.ne.s32.totalorder %s162, %s165
      %p171 = scmp.eq.s32.totalorder %s19, 0
      %p172 = por %p170, %p171
      %p173 = scmp.ne.s32.totalorder %s162, %s165
      %p174 = scmp.eq.s32.totalorder %s24, 1
      %p175 = por %p173, %p174
      %p176 = scmp.ne.s32.totalorder %s165, %s166
      %p177 = scmp.eq.s32.totalorder %s24, 0
      %p178 = por %p176, %p177
      %p179 = scmp.ne.s32.totalorder %s165, %s166
      %p180 = scmp.eq.s32.totalorder %s25, 1
      %p181 = por %p179, %p180
      %p183 = scmp.ne.s32.totalorder %s166, %s182
      %p184 = scmp.eq.s32.totalorder %s25, 0
      %p185 = por %p183, %p184
      %p186 = scmp.le.s32.totalorder 1, %s19
      %p187 = scmp.lt.s32.totalorder %s19, 3
      %p188 = pnand %p186, %p187
      %p189 = pneg %p188
      // Predicated region
      $region9: #{tpu_custom_call.1} parent=5 // pred_check
        _
      $region10: #{tpu_custom_call.1} parent=5 // pred_check_branch
        %191 = sbr.rel (%p188) target = $region12
      $region11: #{tpu_custom_call.1} parent=5 // pred_region
        %s192 = ssub.s32 %s19, 1
      $region12: #{tpu_custom_call.1} parent=5 // pred_fallthru
        _
      %p193 = scmp.lt.s32.totalorder %s19, 2
      // Predicated region
      $region13: #{tpu_custom_call.1} parent=5 // pred_check
        %p194 = pneg %p193
      $region14: #{tpu_custom_call.1} parent=5 // pred_check_branch
        %196 = sbr.rel (%p194) target = $region16
      $region15: #{tpu_custom_call.1} parent=5 // pred_region
        // Predicated region
        $region17: #{tpu_custom_call.1} parent=15 // pred_check
          %p197 = pneg %p60
        $region18: #{tpu_custom_call.1} parent=15 // pred_check_branch
          %199 = sbr.rel (%p197) target = $region20
        $region19: #{tpu_custom_call.1} parent=15 // pred_region
          %s200 = sand.u32 %s50, 1
          %s201 = scalar_lea.sflag [#allocation6], %s200
          %s202 = sand.u32 %s50, 1
          %s203 = smul.addr %s202, 8
          %s204 = scalar_lea.vmem [#allocation5], %s203
          %206 = vsyncadd %s201, 0
          %s207 = sadd.s32 %s27, %s26
          %s208 = smul.addr %s207, 8
          %s209 = scalar_lea.hbm %s0, %s208
          %s211 = sshll.u32 %s209, 4
          %s212 = int_to_ptr.hbm [resolvable:$true] %s211
          %s213 = sshll.u32 %s204, 4
          %s214 = int_to_ptr.vmem [resolvable:$true] %s213
          %216 = dma.hbm_to_vmem [thread:$0]  %s212, 128, %s214, %s201
        $region20: #{tpu_custom_call.1} parent=15 // pred_fallthru
          _
        // Predicated region
        $region21: #{tpu_custom_call.1} parent=15 // pred_check
          %p217 = pneg %p88
        $region22: #{tpu_custom_call.1} parent=15 // pred_check_branch
          %219 = sbr.rel (%p217) target = $region24
        $region23: #{tpu_custom_call.1} parent=15 // pred_region
          %s220 = sand.u32 %s19, 1
          %s221 = scalar_lea.sflag [#allocation9], %s220
          %s222 = sand.u32 %s78, 1
          %s223 = smul.addr %s222, 128
          %s224 = scalar_lea.vmem [#allocation8], %s223
          %s225 = smul.u32 16, %s28
          %227 = vsyncadd %s221, 0
          %s228 = smul.addr %s26, 16
          %s229 = sadd.s32 %s225, %s228
          %s230 = smul.addr %s229, 8
          %s231 = scalar_lea.hbm %s1, %s230
          %s232 = sshll.u32 %s231, 4
          %s233 = int_to_ptr.hbm [resolvable:$true] %s232
          %s234 = sshll.u32 %s224, 4
          %s235 = int_to_ptr.vmem [resolvable:$true] %s234
          %240 = dma.hbm_to_vmem [thread:$0]  %s233, 2048, %s235, %s221, 128, 128, 8
        $region24: #{tpu_custom_call.1} parent=15 // pred_fallthru
          _
        // Predicated region
        $region25: #{tpu_custom_call.1} parent=15 // pred_check
          %p241 = pneg %p116
        $region26: #{tpu_custom_call.1} parent=15 // pred_check_branch
          %243 = sbr.rel (%p241) target = $region28
        $region27: #{tpu_custom_call.1} parent=15 // pred_region
          %s244 = sand.u32 %s19, 1
          %s245 = scalar_lea.sflag [#allocation9], %s244
          %s246 = sand.u32 %s106, 1
          %s247 = smul.addr %s246, 128
          %s248 = scalar_lea.vmem [#allocation10], %s247
          %s249 = smul.u32 16, %s28
          %251 = vsyncadd %s245, 0
          %s252 = smul.addr %s26, 16
          %s253 = sadd.s32 %s249, %s252
          %s254 = smul.addr %s253, 8
          %s255 = scalar_lea.hbm %s2, %s254
          %s256 = sshll.u32 %s255, 4
          %s257 = int_to_ptr.hbm [resolvable:$true] %s256
          %s258 = sshll.u32 %s248, 4
          %s259 = int_to_ptr.vmem [resolvable:$true] %s258
          %264 = dma.hbm_to_vmem [thread:$0]  %s257, 2048, %s259, %s245, 128, 128, 8
        $region28: #{tpu_custom_call.1} parent=15 // pred_fallthru
          _
        // Predicated region
        $region29: #{tpu_custom_call.1} parent=15 // pred_check
          %p265 = pneg %p144
        $region30: #{tpu_custom_call.1} parent=15 // pred_check_branch
          %267 = sbr.rel (%p265) target = $region32
        $region31: #{tpu_custom_call.1} parent=15 // pred_region
          %p268 = scmp.lt.s32.totalorder %s26, 1
          %s269 = scalar_select %p268, %s26, 1
          %p270 = scmp.lt.s32.totalorder %s28, 0
          %s271 = scalar_select %p270, %s28, 0
          %s272 = sadd.s32 %s271, %s269
          %s273 = scalar_lea.vmem %s3, %s272
        $region32: #{tpu_custom_call.1} parent=15 // pred_fallthru
          _
      $region16: #{tpu_custom_call.1} parent=5 // pred_fallthru
        _
      %p274 = scmp.le.s32.totalorder 1, %s19
      %p275 = scmp.lt.s32.totalorder %s19, 3
      %p276 = pnand %p274, %p275
      %p277 = pneg %p276
      // Predicated region
      $region33: #{tpu_custom_call.1} parent=5 // pred_check
        _
      $region34: #{tpu_custom_call.1} parent=5 // pred_check_branch
        %279 = sbr.rel (%p276) target = $region36
      $region35: #{tpu_custom_call.1} parent=5 // pred_region
        %s280 = ssub.s32 %s19, 1
        %s281 = sand.u32 %s53, 1
        %s282 = scalar_lea.sflag [#allocation6], %s281
        %s283 = sand.u32 %s53, 1
        %s284 = smul.addr %s283, 8
        %s285 = scalar_lea.vmem [#allocation5], %s284
        // Predicated region
        $region37: #{tpu_custom_call.1} parent=35 // pred_check
          %p286 = pneg %p66
        $region38: #{tpu_custom_call.1} parent=35 // pred_check_branch
          %288 = sbr.rel (%p286) target = $region40
        $region39: #{tpu_custom_call.1} parent=35 // pred_region
          %290 = dma.done %s282, 128
        $region40: #{tpu_custom_call.1} parent=35 // pred_fallthru
          _
        %s291 = sand.u32 %s24, 1
        %s292 = scalar_lea.sflag [#allocation9], %s291
        %s293 = sand.u32 %s81, 1
        %s294 = smul.addr %s293, 128
        %s295 = scalar_lea.vmem [#allocation8], %s294
        // Predicated region
        $region41: #{tpu_custom_call.1} parent=35 // pred_check
          %p296 = pneg %p94
        $region42: #{tpu_custom_call.1} parent=35 // pred_check_branch
          %298 = sbr.rel (%p296) target = $region44
        $region43: #{tpu_custom_call.1} parent=35 // pred_region
          %300 = dma.done %s292, 2048
        $region44: #{tpu_custom_call.1} parent=35 // pred_fallthru
          _
        %s301 = sand.u32 %s24, 1
        %s302 = scalar_lea.sflag [#allocation9], %s301
        %s303 = sand.u32 %s109, 1
        %s304 = smul.addr %s303, 128
        %s305 = scalar_lea.vmem [#allocation10], %s304
        // Predicated region
        $region45: #{tpu_custom_call.1} parent=35 // pred_check
          %p306 = pneg %p122
        $region46: #{tpu_custom_call.1} parent=35 // pred_check_branch
          %308 = sbr.rel (%p306) target = $region48
        $region47: #{tpu_custom_call.1} parent=35 // pred_region
          %310 = dma.done %s302, 2048
        $region48: #{tpu_custom_call.1} parent=35 // pred_fallthru
          _
        %s311 = sand.u32 %s53, 1
        %s312 = scalar_lea.sflag [#allocation6], %s311
        %s313 = sand.u32 %s53, 1
        %s314 = smul.addr %s313, 8
        %s315 = scalar_lea.vmem [#allocation5], %s314
        %p316 = pneg %p66
        %p317 = pneg %p63
        %s318 = sand.u32 %s24, 1
        %s319 = scalar_lea.sflag [#allocation9], %s318
        %s320 = sand.u32 %s81, 1
        %s321 = smul.addr %s320, 128
        %s322 = scalar_lea.vmem [#allocation8], %s321
        %p323 = pneg %p94
        %p324 = pneg %p91
        %s325 = sand.u32 %s24, 1
        %s326 = scalar_lea.sflag [#allocation9], %s325
        %s327 = sand.u32 %s109, 1
        %s328 = smul.addr %s327, 128
        %s329 = scalar_lea.vmem [#allocation10], %s328
        %p330 = pneg %p122
        %p331 = pneg %p119
        %p332 = scmp.lt.s32.totalorder %s29, 1
        %s333 = scalar_select %p332, %s29, 1
        %p334 = scmp.lt.s32.totalorder %s31, 0
        %s335 = scalar_select %p334, %s31, 0
        %s336 = sadd.s32 %s335, %s333
        %s337 = scalar_lea.vmem %s3, %s336
        %p338 = pneg %p150
        %p339 = pneg %p147
        %p340 = pneg %p178
        %p341 = pneg %p175
        %s342 = sand.u32 %s165, 1
        %s343 = scalar_lea.sflag [#allocation7], %s342
        %s344 = sand.u32 %s165, 1
        %s345 = smul.addr %s344, 8
        %s346 = scalar_lea.vmem [#allocation11], %s345
        %s347 = smul.u32 16, %s31
        %s348 = smul.u32 16, %s31
        %p349 = scmp.lt.s32.totalorder %s29, 1
        %s350 = scalar_select %p349, %s29, 1
        %p351 = scmp.lt.s32.totalorder %s31, 0
        %s352 = scalar_select %p351, %s31, 0
        %s353 = sadd.s32 %s352, %s350
        %s354 = scalar_lea.vmem %s3, %s353
        %p355 = scmp.eq.s32.totalorder %s31, 0
        // Predicated region
        $region49: #{tpu_custom_call.1} parent=35 // pred_check
          %p356 = pneg %p355
        $region50: #{tpu_custom_call.1} parent=35 // pred_check_branch
          %358 = sbr.rel (%p356) target = $region52
        $region51: #{tpu_custom_call.1} parent=35 // pred_region
          %vm359 = vcmask 7168
          %360 = vst.msk [vmem:[#allocation2] sm:$0xff] %vm359, -inf
          %361 = vst.msk [vmem:[#allocation3] sm:$0xff] %vm359, 0.0
          %362 = vst [vmem:[#allocation4] sm:$0xff] 0.0
        $region52: #{tpu_custom_call.1} parent=35 // pred_fallthru
          _
        %v363 = vld [vmem:[%s285] sm:$0xff]
        %v364 = vld [vmem:[%s295] sm:$0xff]
        %v365 = vld [vmem:[%s295 + $0x8] sm:$0xff]
        %v366 = vld [vmem:[%s295 + $0x10] sm:$0xff]
        %v367 = vld [vmem:[%s295 + $0x18] sm:$0xff]
        %v368 = vld [vmem:[%s295 + $0x20] sm:$0xff]
        %v369 = vld [vmem:[%s295 + $0x28] sm:$0xff]
        %v370 = vld [vmem:[%s295 + $0x30] sm:$0xff]
        %v371 = vld [vmem:[%s295 + $0x38] sm:$0xff]
        %v372 = vld [vmem:[%s295 + $0x40] sm:$0xff]
        %v373 = vld [vmem:[%s295 + $0x48] sm:$0xff]
        %v374 = vld [vmem:[%s295 + $0x50] sm:$0xff]
        %v375 = vld [vmem:[%s295 + $0x58] sm:$0xff]
        %v376 = vld [vmem:[%s295 + $0x60] sm:$0xff]
        %v377 = vld [vmem:[%s295 + $0x68] sm:$0xff]
        %v378 = vld [vmem:[%s295 + $0x70] sm:$0xff]
        %v379 = vld [vmem:[%s295 + $0x78] sm:$0xff]
        %v380 = vld [vmem:[%s305] sm:$0xff]
        %v381 = vld [vmem:[%s305 + $0x8] sm:$0xff]
        %v382 = vld [vmem:[%s305 + $0x10] sm:$0xff]
        %v383 = vld [vmem:[%s305 + $0x18] sm:$0xff]
        %v384 = vld [vmem:[%s305 + $0x20] sm:$0xff]
        %v385 = vld [vmem:[%s305 + $0x28] sm:$0xff]
        %v386 = vld [vmem:[%s305 + $0x30] sm:$0xff]
        %v387 = vld [vmem:[%s305 + $0x38] sm:$0xff]
        %v388 = vld [vmem:[%s305 + $0x40] sm:$0xff]
        %v389 = vld [vmem:[%s305 + $0x48] sm:$0xff]
        %v390 = vld [vmem:[%s305 + $0x50] sm:$0xff]
        %v391 = vld [vmem:[%s305 + $0x58] sm:$0xff]
        %v392 = vld [vmem:[%s305 + $0x60] sm:$0xff]
        %v393 = vld [vmem:[%s305 + $0x68] sm:$0xff]
        %v394 = vld [vmem:[%s305 + $0x70] sm:$0xff]
        %v395 = vld [vmem:[%s305 + $0x78] sm:$0xff]
        %396 = vmatpush.xpose.msra.mxu0 %v379
        %397 = vmatpush.xpose.msra.mxu0 %v378
        %398 = vmatpush.xpose.msra.mxu0 %v377
        %399 = vmatpush.xpose.msra.mxu0 %v376
        %400 = vmatpush.xpose.msra.mxu0 %v375
        %401 = vmatpush.xpose.msra.mxu0 %v374
        %402 = vmatpush.xpose.msra.mxu0 %v373
        %403 = vmatpush.xpose.msra.mxu0 %v372
        %404 = vmatpush.xpose.msra.mxu0 %v371
        %405 = vmatpush.xpose.msra.mxu0 %v370
        %406 = vmatpush.xpose.msra.mxu0 %v369
        %407 = vmatpush.xpose.msra.mxu0 %v368
        %408 = vmatpush.xpose.msra.mxu0 %v367
        %409 = vmatpush.xpose.msra.mxu0 %v366
        %410 = vmatpush.xpose.msra.mxu0 %v365
        %411 = vmatpush.xpose.msra.mxu0 %v364
        %412 = vmatmul.f32.gmra.mxu0 %v363
        %v413 = vpop.f32.mrf.mxu0
        %v414 = vadd.f32 0.0, %v413
        %415 = vdwg.mxu0
        %v416 = vld [vmem:[%s354] sm:$0x1]
        %vm417 = vcmp.eq.s32.totalorder %v416, 0
        %v418 = vsel %vm417, 1, 0
        %v419 = vperm.slane %v418, 0
        %vm420 = vcmp.eq.s32.totalorder %v419, 1
        %v421 = vsel %vm420, -1e+09, %v414
        %v422 = vld [vmem:[#allocation2] sm:$0xff]
        %423 = vmax.xlane.f32.xlu0 %v421
        %v424 = vpop.xlane.xlu0 %423
        %v425 = vmax.f32 %v422, %v424
        %v426 = vsub.f32 %v422, %v425
        %v427 = vmul.f32 %v426, 1.442695
        %v428 = vpow.pop %v427
        %430 = vset.pattern.permute.xlu0 0
        %431 = vperm.xlu0 %430, %v425
        %v432 = vpop.permute.xlu0 %431
        %v434 = vsub.f32 %v421, %v432
        %v435 = vmul.f32 %v434, 1.442695
        %v436 = vpow.pop %v435
        %v437 = vld [vmem:[#allocation3] sm:$0xff]
        %v438 = vmul.f32 %v428, %v437
        %439 = vadd.xlane.f32.xlu0 %v436
        %v440 = vpop.xlane.xlu0 %439
        %v441 = vadd.f32 %v438, %v440
        %vm442 = vcmask 7168
        %443 = vst.msk [vmem:[#allocation3] sm:$0xff] %vm442, %v441
        %v444 = vld [vmem:[#allocation4] sm:$0xff]
        %446 = vset.pattern.permute.xlu0 0
        %447 = vperm.xlu0 %446, %v428
        %v448 = vpop.permute.xlu0 %447
        %v450 = vmul.f32 %v448, %v444
        %451 = vmatpush.msra.mxu0 %v395
        %452 = vmatpush.msra.mxu0 %v394
        %453 = vmatpush.msra.mxu0 %v393
        %454 = vmatpush.msra.mxu0 %v392
        %455 = vmatpush.msra.mxu0 %v391
        %456 = vmatpush.msra.mxu0 %v390
        %457 = vmatpush.msra.mxu0 %v389
        %458 = vmatpush.msra.mxu0 %v388
        %459 = vmatpush.msra.mxu0 %v387
        %460 = vmatpush.msra.mxu0 %v386
        %461 = vmatpush.msra.mxu0 %v385
        %462 = vmatpush.msra.mxu0 %v384
        %463 = vmatpush.msra.mxu0 %v383
        %464 = vmatpush.msra.mxu0 %v382
        %465 = vmatpush.msra.mxu0 %v381
        %466 = vmatpush.msra.mxu0 %v380
        %467 = vmatmul.f32.gmra.mxu0 %v436
        %v468 = vpop.f32.mrf.mxu0
        %v469 = vadd.f32 0.0, %v468
        %470 = vdwg.mxu0
        %v471 = vadd.f32 %v450, %v469
        %472 = vst [vmem:[#allocation4] sm:$0xff] %v471
        %473 = vst.msk [vmem:[#allocation2] sm:$0xff] %vm442, %v425
        // Predicated region
        $region53: #{tpu_custom_call.1} parent=35 // pred_check
          %p474 = pneg %p355
        $region54: #{tpu_custom_call.1} parent=35 // pred_check_branch
          %476 = sbr.rel (%p474) target = $region56
        $region55: #{tpu_custom_call.1} parent=35 // pred_region
          %v477 = vld [vmem:[#allocation3] sm:$0xff]
          %v478 = vrcp.pop %v477
          %v479 = vld [vmem:[#allocation4] sm:$0xff]
          %481 = vset.pattern.permute.xlu0 0
          %482 = vperm.xlu0 %481, %v478
          %v483 = vpop.permute.xlu0 %482
          %v485 = vmul.f32 %v479, %v483
          %486 = vst [vmem:[%s346] sm:$0xff] %v485
        $region56: #{tpu_custom_call.1} parent=35 // pred_fallthru
          _
        %s487 = sand.u32 %s165, 1
        %s488 = scalar_lea.sflag [#allocation7], %s487
        %s489 = sand.u32 %s165, 1
        %s490 = smul.addr %s489, 8
        %s491 = scalar_lea.vmem [#allocation11], %s490
        // Predicated region
        $region57: #{tpu_custom_call.1} parent=35 // pred_check
          %p492 = pneg %p175
        $region58: #{tpu_custom_call.1} parent=35 // pred_check_branch
          %494 = sbr.rel (%p492) target = $region60
        $region59: #{tpu_custom_call.1} parent=35 // pred_region
          %496 = vsyncadd %s488, 0
          %s497 = sadd.s32 %s30, %s29
          %s498 = smul.addr %s497, 8
          %s499 = scalar_lea.hbm %s4, %s498
          %s501 = sshll.u32 %s491, 4
          %s502 = int_to_ptr.vmem [resolvable:$true] %s501
          %s503 = sshll.u32 %s499, 4
          %s504 = int_to_ptr.hbm [resolvable:$true] %s503
          %506 = dma.vmem_to_hbm [thread:$0]  %s502, 128, %s504, %s488
        $region60: #{tpu_custom_call.1} parent=35 // pred_fallthru
          _
      $region36: #{tpu_custom_call.1} parent=5 // pred_fallthru
        _
      %p507 = scmp.le.s32.totalorder 2, %s19
      // Predicated region
      $region61: #{tpu_custom_call.1} parent=5 // pred_check
        %p508 = pneg %p507
      $region62: #{tpu_custom_call.1} parent=5 // pred_check_branch
        %510 = sbr.rel (%p508) target = $region64
      $region63: #{tpu_custom_call.1} parent=5 // pred_region
        %s511 = ssub.s32 %s19, 2
        // Predicated region
        $region65: #{tpu_custom_call.1} parent=63 // pred_check
          %p512 = pneg %p181
        $region66: #{tpu_custom_call.1} parent=63 // pred_check_branch
          %514 = sbr.rel (%p512) target = $region68
        $region67: #{tpu_custom_call.1} parent=63 // pred_region
          %s515 = sand.u32 %s166, 1
          %s516 = scalar_lea.sflag [#allocation7], %s515
          %s517 = sand.u32 %s166, 1
          %s518 = smul.addr %s517, 8
          %s519 = scalar_lea.vmem [#allocation11], %s518
          %521 = dma.done %s516, 128
        $region68: #{tpu_custom_call.1} parent=63 // pred_fallthru
          _
      $region64: #{tpu_custom_call.1} parent=5 // pred_fallthru
        _
    $region6: #{tpu_custom_call.1} parent=1 // loop_footer
      %s23 = sadd.s32 1, %s19
    $region7: #{tpu_custom_call.1} parent=1 // loop_footer_branch
      %18 = sbr.rel target = $region3
    $region8: #{tpu_custom_call.1} parent=1 // loop_exit
      _
    %522 = vsyncpa [#allocation6], 1
    %s523 = scalar_lea.sflag [#allocation6], 1
    %524 = vsyncpa %s523, 1
    %525 = vsyncpa [#allocation9], 1
    %s526 = scalar_lea.sflag [#allocation9], 1
    %527 = vsyncpa %s526, 1
    %528 = vsyncpa [#allocation7], 1
    %s529 = scalar_lea.sflag [#allocation7], 1
    %530 = vsyncpa %s529, 1

</llo_original>
